<compile_context>
chip_gen: v5e
topology: v5e:2x2
jax: 0.10.0
libtpu: 0.0.40
codegen_flags: <defaults>
</compile_context>

<pallas_src>
import functools

import jax
import jax.numpy as jnp
from jax import lax
from jax.experimental import pallas as pl
from jax.experimental.pallas import tpu as pltpu

LANES = 128
MAX_TILE_ROWS = 8192               # 8192 * 128 * 4 B = 4 MiB per f32 input buffer
VMEM_LIMIT_BYTES = 32 * 1024 * 1024  # enough for 2 inputs x 2 buffers at max tile


def _round_up(n, m):
    return ((n + m - 1) // m) * m


def _sublane_multiple(*dtypes):
    # f32 -> 8 rows, bf16/f16 -> 16 rows, int8/fp8 -> 32 rows per sublane tile.
    m = 8
    for dt in dtypes:
        m = max(m, 32 // jnp.dtype(dt).itemsize)
    return m


def _neg_bce_elem(x, t):
    """Per-element NEGATIVE clamped BCE-with-logits (negation hoisted to caller).

    log(sigmoid(x))     =  min(x, 0) - log1p(exp(-|x|))
    log(1 - sigmoid(x)) = -max(x, 0) - log1p(exp(-|x|))
    Both log terms clamped at -100, matching torch.nn.functional.binary_cross_entropy.
    """
    sp = jnp.log1p(jnp.exp(-jnp.abs(x)))
    log_p = jnp.maximum(jnp.minimum(x, 0.0) - sp, -100.0)
    log_1mp = jnp.maximum(-jnp.maximum(x, 0.0) - sp, -100.0)
    # == t*log_p + (1-t)*log_1mp, but with one fewer mul/sub per element.
    return log_1mp + t * (log_p - log_1mp)


def _neg_bce_partial_kernel(x_ref, t_ref, out_ref, *, rows_valid, tile_rows, needs_mask):
    """Per-tile partial sum of negative clamped BCE, reduced to one (8,128) vreg."""
    i = pl.program_id(0)

    x = x_ref[...].astype(jnp.float32)
    t = t_ref[...].astype(jnp.float32)
    neg_bce = _neg_bce_elem(x, t)

    def _reduce(v):
        # Elementwise VPU adds only; cross-lane reduction happens once in the
        # wrapper epilogue.
        return v.reshape(tile_rows // 8, 8, LANES).sum(axis=0, keepdims=True)

    out_ref[...] = _reduce(neg_bce)

    if needs_mask:
        # Only the FINAL tile can run past the valid rows; recompute its
        # partial with out-of-bounds rows zeroed. Non-final tiles pay nothing.
        @pl.when(i == pl.num_programs(0) - 1)
        def _():
            row = lax.broadcasted_iota(jnp.int32, (tile_rows, LANES), 0)
            valid = (i * tile_rows + row) < rows_valid
            out_ref[...] = _reduce(jnp.where(valid, neg_bce, 0.0))


def focal_loss(inputs, targets, alpha, gamma, smooth=1):
    """Pallas implementation of FocalLoss.forward (`smooth` is unused, as in torch)."""
    x_flat = jnp.reshape(inputs, (-1,))
    t_flat = jnp.reshape(targets, (-1,))
    n_total = x_flat.shape[0]

    rows = n_total // LANES          # full 128-lane rows handled by the kernel
    n_main = rows * LANES

    neg_bce_sum = jnp.float32(0.0)

    if rows > 0:
        # In the common case (n_total % 128 == 0) these slices are identities;
        # otherwise we only touch the aligned prefix (no jnp.pad HBM copy).
        x2d = x_flat[:n_main].reshape(rows, LANES)
        t2d = t_flat[:n_main].reshape(rows, LANES)

        sub = _sublane_multiple(x2d.dtype, t2d.dtype)
        if rows > 512:
            # >= 2 grid steps so v7x's two TensorCores both get work; cap the
            # tile so VMEM stays within the explicit limit on every generation.
            tile_rows = min(MAX_TILE_ROWS, _round_up(pl.cdiv(rows, 2), sub))
        else:
            tile_rows = _round_up(rows, sub)
        num_blocks = pl.cdiv(rows, tile_rows)
        needs_mask = (num_blocks * tile_rows) != rows

        kernel = functools.partial(
            _neg_bce_partial_kernel,
            rows_valid=rows,
            tile_rows=tile_rows,
            needs_mask=needs_mask,
        )

        partials = pl.pallas_call(
            kernel,
            out_shape=jax.ShapeDtypeStruct((num_blocks, 8, LANES), jnp.float32),
            grid=(num_blocks,),
            in_specs=[
                pl.BlockSpec((tile_rows, LANES), lambda i: (i, 0)),
                pl.BlockSpec((tile_rows, LANES), lambda i: (i, 0)),
            ],
            out_specs=pl.BlockSpec((1, 8, LANES), lambda i: (i, 0, 0)),
            compiler_params=pltpu.CompilerParams(
                dimension_semantics=("parallel",),
                vmem_limit_bytes=VMEM_LIMIT_BYTES,
            ),
        )(x2d, t2d)
        neg_bce_sum = neg_bce_sum + jnp.sum(partials)

    if n_main != n_total:
        # <128-element unaligned tail: plain JAX, added to the partial sum.
        x_tail = x_flat[n_main:].astype(jnp.float32)
        t_tail = t_flat[n_main:].astype(jnp.float32)
        neg_bce_sum = neg_bce_sum + jnp.sum(_neg_bce_elem(x_tail, t_tail))

    # Scalar epilogue (runs once): global negation, mean BCE + focal transform.
    bce_mean = -neg_bce_sum / jnp.float32(n_total)
    bce_exp = jnp.exp(-bce_mean)
    one_minus = 1.0 - bce_exp
    if isinstance(gamma, (int, float)) and float(gamma) == 2.0:
        pow_term = jnp.square(one_minus)
    else:
        pow_term = one_minus ** gamma
    return alpha * pow_term * bce_mean


def _focal_loss_ref(inputs, targets, alpha, gamma):
    # Torch-faithful reference: sigmoid, then BCE with log terms clamped at -100.
    p = jax.nn.sigmoid(jnp.reshape(inputs, (-1,)).astype(jnp.float32))
    t = jnp.reshape(targets, (-1,)).astype(jnp.float32)
    log_p = jnp.maximum(jnp.log(p), -100.0)
    log_1mp = jnp.maximum(jnp.log(1.0 - p), -100.0)
    bce = jnp.mean(-(t * log_p + (1.0 - t) * log_1mp))
    return alpha * (1.0 - jnp.exp(-bce)) ** gamma * bce


if __name__ == "__main__":
    key = jax.random.PRNGKey(0)
    k1, k2 = jax.random.split(key)

    B, C, H, W = 2, 4, 16, 16
    inputs = jax.random.normal(k1, (B, C, H, W), jnp.float32)        # logits (NCHW)
    targets = jax.random.bernoulli(k2, 0.5, (B, C, H, W)).astype(jnp.float32)

    alpha = 0.8
    gamma = 2.0

    loss = focal_loss(inputs, targets, alpha, gamma)
    loss = jax.block_until_ready(loss)

    ref = _focal_loss_ref(inputs, targets, alpha, gamma)
    assert jnp.allclose(loss, ref, rtol=1e-4, atol=1e-6), (loss, ref)

    print("KERNEL_OK")
</pallas_src>

<mosaic_0001>
module attributes {stable_mosaic.version = 11 : i64} {
  func.func @_neg_bce_partial_kernel(%arg0: i32, %arg1: memref<16x128xf32, #tpu.memory_space<vmem>>, %arg2: memref<16x128xf32, #tpu.memory_space<vmem>>, %arg3: memref<1x8x128xf32, #tpu.memory_space<vmem>>) attributes {dimension_semantics = [#tpu.dimension_semantics<parallel>], iteration_bounds = array<i64: 1>, scalar_prefetch = 0 : i64, scratch_operands = 0 : i64, tpu.core_type = #tpu.core_type<tc>, window_params = [{transform_indices = @transform_0, window_bounds = array<i64: 16, 128>}, {transform_indices = @transform_1, window_bounds = array<i64: 16, 128>}, {transform_indices = @transform_2, window_bounds = array<i64: 1, 8, 128>}]} {
    %c0 = arith.constant 0 : index
    %c0_0 = arith.constant 0 : index
    %0 = vector.load %arg1[%c0, %c0_0] : memref<16x128xf32, #tpu.memory_space<vmem>>, vector<16x128xf32>
    %c0_1 = arith.constant 0 : index
    %c0_2 = arith.constant 0 : index
    %1 = vector.load %arg2[%c0_1, %c0_2] : memref<16x128xf32, #tpu.memory_space<vmem>>, vector<16x128xf32>
    %2 = math.absf %0 : vector<16x128xf32>
    %cst = arith.constant 0.000000e+00 : f32
    %3 = vector.broadcast %cst : f32 to vector<16x128xf32>
    %4 = arith.subf %3, %2 : vector<16x128xf32>
    %5 = math.exp %4 : vector<16x128xf32>
    %6 = math.log1p %5 : vector<16x128xf32>
    %cst_3 = arith.constant 0.000000e+00 : f32
    %7 = vector.broadcast %cst_3 : f32 to vector<16x128xf32>
    %8 = arith.minimumf %0, %7 : vector<16x128xf32>
    %9 = arith.subf %8, %6 : vector<16x128xf32>
    %cst_4 = arith.constant -1.000000e+02 : f32
    %10 = vector.broadcast %cst_4 : f32 to vector<16x128xf32>
    %11 = arith.maximumf %9, %10 : vector<16x128xf32>
    %cst_5 = arith.constant 0.000000e+00 : f32
    %12 = vector.broadcast %cst_5 : f32 to vector<16x128xf32>
    %13 = arith.maximumf %0, %12 : vector<16x128xf32>
    %cst_6 = arith.constant 0.000000e+00 : f32
    %14 = vector.broadcast %cst_6 : f32 to vector<16x128xf32>
    %15 = arith.subf %14, %13 : vector<16x128xf32>
    %16 = arith.subf %15, %6 : vector<16x128xf32>
    %cst_7 = arith.constant -1.000000e+02 : f32
    %17 = vector.broadcast %cst_7 : f32 to vector<16x128xf32>
    %18 = arith.maximumf %16, %17 : vector<16x128xf32>
    %19 = arith.subf %11, %18 : vector<16x128xf32>
    %20 = arith.mulf %1, %19 : vector<16x128xf32>
    %21 = arith.addf %18, %20 : vector<16x128xf32>
    %22 = vector.shape_cast %21 : vector<16x128xf32> to vector<2x8x128xf32>
    %cst_8 = arith.constant dense<0.000000e+00> : vector<8x128xf32>
    %23 = vector.multi_reduction <add>, %22, %cst_8 [0] : vector<2x8x128xf32> to vector<8x128xf32>
    %24 = vector.shape_cast %23 : vector<8x128xf32> to vector<1x8x128xf32>
    %c0_9 = arith.constant 0 : index
    %c0_10 = arith.constant 0 : index
    %c0_11 = arith.constant 0 : index
    %25 = vector.load %arg3[%c0_9, %c0_10, %c0_11] : memref<1x8x128xf32, #tpu.memory_space<vmem>>, vector<1x8x128xf32>
    tpu.vector_store %arg3[%c0_9, %c0_10, %c0_11], %24 {strides = array<i32>} : memref<1x8x128xf32, #tpu.memory_space<vmem>>, vector<1x8x128xf32>,
    return
  }
  func.func @transform_0(%arg0: i32) -> (i32, i32) {
    %c0_i32 = arith.constant 0 : i32
    %c0_i32_0 = arith.constant 0 : i32
    return %arg0, %c0_i32 : i32, i32
  }
  func.func @transform_1(%arg0: i32) -> (i32, i32) {
    %c0_i32 = arith.constant 0 : i32
    %c0_i32_0 = arith.constant 0 : i32
    return %arg0, %c0_i32 : i32, i32
  }
  func.func @transform_2(%arg0: i32) -> (i32, i32, i32) {
    %c0_i32 = arith.constant 0 : i32
    %c0_i32_0 = arith.constant 0 : i32
    %c0_i32_1 = arith.constant 0 : i32
    return %arg0, %c0_i32, %c0_i32_0 : i32, i32, i32
  }
}

</mosaic_0001>

<llo_original>
// kernel: tpu_custom_call.1
$region0: #{tpu_custom_call.1}
  #allocation0 [shape = 'u32[]', space=smem, size = 0x4, offset = 0x4, fixed_abs, tag = 'smem constant byte address 0x4 - core index']
  #allocation1 [shape = 'u32[72,128]{1,0:T(1,128)}', space=vmem, size = 0x9000, scoped, tag = 'internal scratch']
  %s0 = inlined_call_operand.hbm [shape: f32[16,128], index: 0, kind: input, shape index: {}]
  %s1 = inlined_call_operand.hbm [shape: f32[16,128], index: 1, kind: input, shape index: {}]
  %s2 = inlined_call_operand.hbm [shape: f32[1,8,128], index: 2, kind: output, shape index: {}]
  %s3 = sld [smem:[#allocation0]]
  $region26: #{tpu_custom_call.1} parent=0
    _
  %s5 = ssub.s32 1, %s3
  %s6 = scalar_select 0, %s5, %s3
  $region1: #{tpu_custom_call.1} parent=0
    #allocation2 [shape = 'u8[8192]{0}', space=vmem, size = 0x2000, scoped, tag = 'input window, operand 0, single buffered']
    #allocation3 [shape = 's32[1]{0}', space=sflag, size = 0x4, scoped, tag = 'scoped memory for tpu_custom_call.1']
    #allocation4 [shape = 's32[1]{0}', space=sflag, size = 0x4, scoped, tag = 'scoped memory for tpu_custom_call.1']
    #allocation5 [shape = 'u8[8192]{0}', space=vmem, size = 0x2000, scoped, tag = 'input window, operand 1, single buffered']
    #allocation6 [shape = 's32[1]{0}', space=sflag, size = 0x4, scoped, tag = 'scoped memory for tpu_custom_call.1']
    #allocation7 [shape = 'u8[4096]{0}', space=vmem, size = 0x1000, scoped, tag = 'output window, operand 0, single buffered']
    %7 = vsyncpa [#allocation3], 0
    %8 = vsyncpa [#allocation6], 0
    %9 = vsyncpa [#allocation4], 0
    // Predicated region
    $region2: #{tpu_custom_call.1} parent=1 // pred_check
      _
    $region3: #{tpu_custom_call.1} parent=1 // pred_check_branch
      %11 = sbr.rel (0) target = $region5
    $region4: #{tpu_custom_call.1} parent=1 // pred_region
      %13 = vsyncadd [#allocation3], 0
      %s14 = sshll.u32 %s0, 4
      %s15 = int_to_ptr.hbm [resolvable:$true] %s14
      %s16 = sshll.u32 [#allocation2], 4
      %s17 = int_to_ptr.vmem [resolvable:$true] %s16
      %22 = dma.hbm_to_vmem [thread:$0]  %s15, 256, %s17, [#allocation3], 128, 128, 8
    $region5: #{tpu_custom_call.1} parent=1 // pred_fallthru
      _
    // Predicated region
    $region6: #{tpu_custom_call.1} parent=1 // pred_check
      _
    $region7: #{tpu_custom_call.1} parent=1 // pred_check_branch
      %24 = sbr.rel (0) target = $region9
    $region8: #{tpu_custom_call.1} parent=1 // pred_region
      %26 = vsyncadd [#allocation6], 0
      %s27 = sshll.u32 %s1, 4
      %s28 = int_to_ptr.hbm [resolvable:$true] %s27
      %s29 = sshll.u32 [#allocation5], 4
      %s30 = int_to_ptr.vmem [resolvable:$true] %s29
      %35 = dma.hbm_to_vmem [thread:$0]  %s28, 256, %s30, [#allocation6], 128, 128, 8
    $region9: #{tpu_custom_call.1} parent=1 // pred_fallthru
      _
    // Predicated region
    $region10: #{tpu_custom_call.1} parent=1 // pred_check
      _
    $region11: #{tpu_custom_call.1} parent=1 // pred_check_branch
      %37 = sbr.rel (0) target = $region13
    $region12: #{tpu_custom_call.1} parent=1 // pred_region
      %39 = dma.done [#allocation3], 256
    $region13: #{tpu_custom_call.1} parent=1 // pred_fallthru
      _
    // Predicated region
    $region14: #{tpu_custom_call.1} parent=1 // pred_check
      _
    $region15: #{tpu_custom_call.1} parent=1 // pred_check_branch
      %41 = sbr.rel (0) target = $region17
    $region16: #{tpu_custom_call.1} parent=1 // pred_region
      %43 = dma.done [#allocation6], 256
    $region17: #{tpu_custom_call.1} parent=1 // pred_fallthru
      _
    %v44 = vld [vmem:[#allocation2] sm:$0xff]
    %v45 = vld [vmem:[#allocation2 + $0x8] sm:$0xff]
    %v46 = vld [vmem:[#allocation5] sm:$0xff]
    %v47 = vld [vmem:[#allocation5 + $0x8] sm:$0xff]
    %v48 = vand.u32 2147483647, %v44
    %v49 = vand.u32 2147483647, %v45
    %v50 = vsub.f32 0.0, %v48
    %v51 = vsub.f32 0.0, %v49
    %v52 = vmul.f32 %v50, 1.442695
    %v53 = vpow.pop %v52
    %v54 = vmul.f32 %v51, 1.442695
    %v55 = vpow.pop %v54
    %v56 = vadd.f32 %v53, 1.0
    %v57 = vlog2.pop %v56
    %v58 = vmul.f32 %v57, 0.6931472
    %v59 = vmul.f32 -0.5, %v53
    %v60 = vadd.f32 %v59, 1.0
    %v61 = vmul.f32 %v60, %v53
    %v62 = vand.u32 2147483647, %v53
    %vm63 = vcmp.lt.f32.partialorder %v62, 0.0004427343
    %v64 = vsel %vm63, %v61, %v58
    %v65 = vadd.f32 %v55, 1.0
    %v66 = vlog2.pop %v65
    %v67 = vmul.f32 %v66, 0.6931472
    %v68 = vmul.f32 -0.5, %v55
    %v69 = vadd.f32 %v68, 1.0
    %v70 = vmul.f32 %v69, %v55
    %v71 = vand.u32 2147483647, %v55
    %vm72 = vcmp.lt.f32.partialorder %v71, 0.0004427343
    %v73 = vsel %vm72, %v70, %v67
    %v74 = vmin.f32 %v44, 0.0
    %v75 = vmin.f32 %v45, 0.0
    %v76 = vsub.f32 %v74, %v64
    %v77 = vsub.f32 %v75, %v73
    %v78 = vmax.f32 %v76, -100.0
    %v79 = vmax.f32 %v77, -100.0
    %v80 = vmax.f32 %v44, 0.0
    %v81 = vmax.f32 %v45, 0.0
    %v82 = vsub.f32 0.0, %v80
    %v83 = vsub.f32 0.0, %v81
    %v84 = vsub.f32 %v82, %v64
    %v85 = vsub.f32 %v83, %v73
    %v86 = vmax.f32 %v84, -100.0
    %v87 = vmax.f32 %v85, -100.0
    %v88 = vsub.f32 %v78, %v86
    %v89 = vsub.f32 %v79, %v87
    %v90 = vmul.f32 %v46, %v88
    %v91 = vmul.f32 %v47, %v89
    %v92 = vadd.f32 %v86, %v90
    %v93 = vadd.f32 %v87, %v91
    %v94 = vadd.f32 %v92, %v93
    %95 = vst [vmem:[#allocation7] sm:$0xff] %v94
    // Predicated region
    $region18: #{tpu_custom_call.1} parent=1 // pred_check
      _
    $region19: #{tpu_custom_call.1} parent=1 // pred_check_branch
      %97 = sbr.rel (0) target = $region21
    $region20: #{tpu_custom_call.1} parent=1 // pred_region
      %99 = vsyncadd [#allocation4], 0
      %s101 = sshll.u32 [#allocation7], 4
      %s102 = int_to_ptr.vmem [resolvable:$true] %s101
      %s103 = sshll.u32 %s2, 4
      %s104 = int_to_ptr.hbm [resolvable:$true] %s103
      %106 = dma.vmem_to_hbm [thread:$0]  %s102, 128, %s104, [#allocation4]
    $region21: #{tpu_custom_call.1} parent=1 // pred_fallthru
      _
    // Predicated region
    $region22: #{tpu_custom_call.1} parent=1 // pred_check
      _
    $region23: #{tpu_custom_call.1} parent=1 // pred_check_branch
      %108 = sbr.rel (0) target = $region25
    $region24: #{tpu_custom_call.1} parent=1 // pred_region
      %110 = dma.done [#allocation4], 128
    $region25: #{tpu_custom_call.1} parent=1 // pred_fallthru
      _
    %111 = vsyncpa [#allocation3], 1
    %112 = vsyncpa [#allocation6], 1
    %113 = vsyncpa [#allocation4], 1

</llo_original>
